<compile_context>
chip_gen: v7x
topology: tpu7x:2x2x1
jax: 0.10.0
libtpu: 0.0.40
codegen_flags: <defaults>
</compile_context>

<pallas_src>
import functools

import jax
import jax.numpy as jnp
import numpy as np
from jax import lax
from jax.experimental import pallas as pl
from jax.experimental.pallas import tpu as pltpu

_LANE = 128
_SQRT_LOG2E = float(np.sqrt(np.log2(np.e)))  # folded into the per-basis scale


def gaussian_fit_kernel(ab_ref, w_ref, xs_ref, y_ref):
    """ab_ref: (K, 2)  col 0 = xk, col 1 = 0.5*sqrt(log2 e)/clamp(sigm, 1e-4)
       w_ref:  (C, K)  yk^T (per-curve weights)
       xs_ref: (1, TF) frame positions, F on the lane axis
       y_ref:  (C, TF) y^T, lane-dense output tile (single full-block store)
    """
    xs = xs_ref[...]                      # (1, TF)
    xk = ab_ref[:, 0:1]                   # (K, 1)
    inv = ab_ref[:, 1:2]                  # (K, 1), precomputed in wrapper
    z = (xs - xk) * inv                   # (K, TF), one sublane broadcast of xs
    m_t = jnp.exp2(-(z * z))              # Gaussian basis M^T; exp2 on the EUP,
                                          # log2e already folded into inv.
    # K-contraction on the MXU instead of C cross-sublane XLU reductions.
    # precision=HIGHEST is required to hold the 1e-4 f32 tolerance.
    y_ref[...] = lax.dot_general(
        w_ref[...], m_t, (((1,), (0,)), ((), ())),
        preferred_element_type=jnp.float32,
        precision=lax.Precision.HIGHEST)


def _round_up(x, m):
    return ((x + m - 1) // m) * m


def gaussian_fit_forward_t(params_flat, xs, num_curves, *, tile_frames=65536):
    """Returns (y_t, num_frames): y_t has shape (C, F_pad), frames on the lane
    axis.  Columns >= num_frames are padding and must be ignored by consumers.
    """
    nk = params_flat.shape[0] // (2 + num_curves)
    num_frames = xs.shape[0]
    params = params_flat.reshape(2 + num_curves, nk).astype(jnp.float32)

    # --- scalar prep hoisted out of the kernel (K=8 elements, negligible) ---
    xk = params[0, :]
    sigm = jnp.maximum(params[1, :], 1e-4)            # torch.clamp(min=1e-4)
    inv = (0.5 * _SQRT_LOG2E) / sigm                  # exp2 base-change folded in
    ab = jnp.stack([xk, inv], axis=1)                 # (K, 2)
    w_ct = params[2:, :]                              # (C, K) == yk^T

    # --- frame tiling: big lane-dense tiles, but keep >=4 blocks when F is
    # large so v7x's two TensorCores both get work (no-op on v5e/v6e). ---
    f_lane = _round_up(num_frames, _LANE)
    tf = min(tile_frames, max(_LANE, _round_up(pl.cdiv(f_lane, 4), 512)))
    tf = min(tf, f_lane)
    f_pad = _round_up(f_lane, tf)

    xs_row = jnp.pad(xs.astype(jnp.float32)[None, :],
                     ((0, 0), (0, f_pad - num_frames)))

    grid = (f_pad // tf,)
    cost = pl.CostEstimate(
        flops=2 * nk * num_curves * f_pad + 3 * nk * f_pad,
        transcendentals=nk * f_pad,
        bytes_accessed=4 * (f_pad + num_curves * f_pad
                            + int(ab.size) + int(w_ct.size)),
    )
    y_t = pl.pallas_call(
        gaussian_fit_kernel,
        out_shape=jax.ShapeDtypeStruct((num_curves, f_pad), jnp.float32),
        grid=grid,
        in_specs=[
            pl.BlockSpec((nk, 2), lambda i: (0, 0)),             # broadcast
            pl.BlockSpec((num_curves, nk), lambda i: (0, 0)),    # broadcast
            pl.BlockSpec((1, tf), lambda i: (0, i)),
        ],
        out_specs=pl.BlockSpec((num_curves, tf), lambda i: (0, i)),
        compiler_params=pltpu.CompilerParams(
            dimension_semantics=("parallel",),        # v7x: shard F over 2 TCs
            vmem_limit_bytes=48 * 1024 * 1024,
        ),
        cost_estimate=cost,
    )(ab, w_ct, xs_row)
    return y_t, num_frames


def gaussian_fit_forward(params_flat, xs, num_curves, *, tile_frames=65536):
    """Matches GaussianFit.forward(params, xs): returns y of shape (F, C).
    The final slice+transpose is layout plumbing only; performance-sensitive
    consumers should use gaussian_fit_forward_t and read y^T directly."""
    y_t, num_frames = gaussian_fit_forward_t(
        params_flat, xs, num_curves, tile_frames=tile_frames)
    return y_t[:, :num_frames].T


if __name__ == "__main__":
    # Small shapes consistent with the module (num_t=num_frames, num_base=nk).
    num_frames, nk, num_curves, sigma = 16, 8, 4, 5.0

    # Deterministic synthetic params (mirrors initParams layout: [xk; sigma; ws]).
    key = jax.random.PRNGKey(0)
    ws = jax.random.normal(key, (num_curves, nk), dtype=jnp.float32)
    params = jnp.zeros((2 + num_curves, nk), jnp.float32)
    params = params.at[0, :].set(
        jnp.linspace(0.0, num_frames - 1, nk, dtype=jnp.float32))
    params = params.at[1, :].set(sigma)
    params = params.at[2:, :].set(ws)
    params_flat = params.flatten()

    xs = jnp.linspace(0.0, num_frames - 1, num_frames, dtype=jnp.float32)

    y = gaussian_fit_forward(params_flat, xs, num_curves)
    y = jax.block_until_ready(y)

    # float64 numpy reference (exact forward semantics of GaussianFit.forward).
    xk_r = np.asarray(params[0, :], np.float64)
    sigm_r = np.maximum(np.asarray(params[1, :], np.float64), 1e-4)
    yk_r = np.asarray(params[2:, :], np.float64).T            # (K, C)
    x_mu = np.asarray(xs, np.float64)[:, None] - xk_r[None, :]
    M = np.exp(-((0.5 * x_mu / sigm_r[None, :]) ** 2))
    y_ref = M @ yk_r                                          # (F, C)

    assert y.shape == (num_frames, num_curves)
    assert y.dtype == jnp.float32
    assert np.allclose(np.asarray(y, np.float64), y_ref, atol=1e-4, rtol=1e-4)
    print("KERNEL_OK")
</pallas_src>

<mosaic_0001>
module attributes {stable_mosaic.version = 11 : i64} {
  func.func @gaussian_fit_kernel(%arg0: i32, %arg1: memref<8x2xf32, #tpu.memory_space<vmem>>, %arg2: memref<4x8xf32, #tpu.memory_space<vmem>>, %arg3: memref<1x128xf32, #tpu.memory_space<vmem>>, %arg4: memref<4x128xf32, #tpu.memory_space<vmem>>) attributes {dimension_semantics = [#tpu.dimension_semantics<parallel>], iteration_bounds = array<i64: 1>, scalar_prefetch = 0 : i64, scratch_operands = 0 : i64, tpu.core_type = #tpu.core_type<tc>, window_params = [{pipeline_mode = #tpu.pipeline_mode<synchronous>, transform_indices = @transform_0, window_bounds = array<i64: 8, 2>}, {pipeline_mode = #tpu.pipeline_mode<synchronous>, transform_indices = @transform_1, window_bounds = array<i64: 4, 8>}, {transform_indices = @transform_2, window_bounds = array<i64: 1, 128>}, {transform_indices = @transform_3, window_bounds = array<i64: 4, 128>}]} {
    %c0 = arith.constant 0 : index
    %c0_0 = arith.constant 0 : index
    %0 = vector.load %arg3[%c0, %c0_0] : memref<1x128xf32, #tpu.memory_space<vmem>>, vector<1x128xf32>
    %c0_1 = arith.constant 0 : index
    %c0_2 = arith.constant 0 : index
    %1 = vector.load %arg1[%c0_1, %c0_2] : memref<8x2xf32, #tpu.memory_space<vmem>>, vector<8x1xf32>
    %c0_3 = arith.constant 0 : index
    %c1 = arith.constant 1 : index
    %2 = vector.load %arg1[%c0_3, %c1] : memref<8x2xf32, #tpu.memory_space<vmem>>, vector<8x1xf32>
    %3 = vector.broadcast %0 : vector<1x128xf32> to vector<8x128xf32>
    %4 = vector.broadcast %1 : vector<8x1xf32> to vector<8x128xf32>
    %5 = arith.subf %3, %4 : vector<8x128xf32>
    %6 = vector.broadcast %2 : vector<8x1xf32> to vector<8x128xf32>
    %7 = arith.mulf %5, %6 : vector<8x128xf32>
    %8 = arith.mulf %7, %7 : vector<8x128xf32>
    %cst = arith.constant 0.000000e+00 : f32
    %9 = vector.broadcast %cst : f32 to vector<8x128xf32>
    %10 = arith.subf %9, %8 : vector<8x128xf32>
    %11 = math.exp2 %10 : vector<8x128xf32>
    %c0_4 = arith.constant 0 : index
    %c0_5 = arith.constant 0 : index
    %12 = vector.load %arg2[%c0_4, %c0_5] : memref<4x8xf32, #tpu.memory_space<vmem>>, vector<4x8xf32>
    %cst_6 = arith.constant dense<0.000000e+00> : vector<4x128xf32>
    %13 = tpu.matmul %12, %11, %cst_6 {dimension_numbers = #tpu.dot_dimension_numbers<[1], [0], [0], [1], [0, 0, 1, 1], [], []>, precision = #tpu.contract_precision<fp32>} : vector<4x8xf32>, vector<8x128xf32>, vector<4x128xf32> -> vector<4x128xf32>
    %c0_7 = arith.constant 0 : index
    %c0_8 = arith.constant 0 : index
    %14 = vector.load %arg4[%c0_7, %c0_8] : memref<4x128xf32, #tpu.memory_space<vmem>>, vector<4x128xf32>
    tpu.vector_store %arg4[%c0_7, %c0_8], %13 {strides = array<i32>} : memref<4x128xf32, #tpu.memory_space<vmem>>, vector<4x128xf32>,
    return
  }
  func.func @transform_0(%arg0: i32) -> (i32, i32) {
    %c0_i32 = arith.constant 0 : i32
    %c0_i32_0 = arith.constant 0 : i32
    %c0_i32_1 = arith.constant 0 : i32
    return %c0_i32, %c0_i32_0 : i32, i32
  }
  func.func @transform_1(%arg0: i32) -> (i32, i32) {
    %c0_i32 = arith.constant 0 : i32
    %c0_i32_0 = arith.constant 0 : i32
    %c0_i32_1 = arith.constant 0 : i32
    return %c0_i32, %c0_i32_0 : i32, i32
  }
  func.func @transform_2(%arg0: i32) -> (i32, i32) {
    %c0_i32 = arith.constant 0 : i32
    %c0_i32_0 = arith.constant 0 : i32
    return %c0_i32, %arg0 : i32, i32
  }
  func.func @transform_3(%arg0: i32) -> (i32, i32) {
    %c0_i32 = arith.constant 0 : i32
    %c0_i32_0 = arith.constant 0 : i32
    return %c0_i32, %arg0 : i32, i32
  }
}

</mosaic_0001>

<llo_original>
// kernel: tpu_custom_call.1
$region0: #{tpu_custom_call.1}
  #allocation0 [shape = 'u32[]', space=smem, size = 0x4, offset = 0x4, fixed_abs, tag = 'smem constant byte address 0x4 - core index']
  #allocation1 [shape = 'u32[144,128]{1,0:T(1,128)}', space=vmem, size = 0x12000, scoped, tag = 'internal scratch']
  %s0 = inlined_call_operand.vmem [shape: f32[8,2], index: 0, kind: input, shape index: {}]
  %s1 = inlined_call_operand.vmem [shape: f32[4,8], index: 1, kind: input, shape index: {}]
  %s2 = inlined_call_operand.vmem [shape: f32[1,128], index: 2, kind: input, shape index: {}]
  %s3 = inlined_call_operand.hbm [shape: f32[4,128], index: 3, kind: output, shape index: {}]
  %s4 = sld [smem:[#allocation0]]
  $region22: #{tpu_custom_call.1} parent=0
    _
  %s6 = ssub.s32 1, %s4
  %s7 = scalar_select 0, %s6, %s4
  $region1: #{tpu_custom_call.1} parent=0
    #allocation2 [shape = 'u8[2048]{0}', space=vmem, size = 0x800, scoped, tag = 'output window, operand 0, single buffered']
    #allocation3 [shape = 's32[1]{0}', space=sflag, size = 0x4, scoped, tag = 'scoped memory for tpu_custom_call.1']
    %8 = vsyncpa [#allocation3], 0
    // Predicated region
    $region2: #{tpu_custom_call.1} parent=1 // pred_check
      _
    $region3: #{tpu_custom_call.1} parent=1 // pred_check_branch
      %10 = sbr.rel (0) target = $region5
    $region4: #{tpu_custom_call.1} parent=1 // pred_region
      _
    $region5: #{tpu_custom_call.1} parent=1 // pred_fallthru
      _
    // Predicated region
    $region6: #{tpu_custom_call.1} parent=1 // pred_check
      _
    $region7: #{tpu_custom_call.1} parent=1 // pred_check_branch
      %12 = sbr.rel (0) target = $region9
    $region8: #{tpu_custom_call.1} parent=1 // pred_region
      _
    $region9: #{tpu_custom_call.1} parent=1 // pred_fallthru
      _
    // Predicated region
    $region10: #{tpu_custom_call.1} parent=1 // pred_check
      _
    $region11: #{tpu_custom_call.1} parent=1 // pred_check_branch
      %14 = sbr.rel (0) target = $region13
    $region12: #{tpu_custom_call.1} parent=1 // pred_region
      _
    $region13: #{tpu_custom_call.1} parent=1 // pred_fallthru
      _
    %v15 = vld [vmem:[%s2] sm:$0x1]
    %v16 = vld [vmem:[%s0] sm:$0xff]
    %v18 = vlaneseq
    %v19 = vshrl.u32 %v18, 7
    %v20 = vsub.s32 0, %v19
    %v21 = vrot.slane %v15, %v20
    %24 = vset.pattern.permute.xlu0 0
    %25 = vperm.xlu0 %24, %v16
    %v26 = vpop.permute.xlu0 %25
    %v28 = vsub.f32 %v21, %v26
    %29 = vset.pattern.permute.xlu0 1
    %30 = vperm.xlu0 %29, %v16
    %v31 = vpop.permute.xlu0 %30
    %v33 = vmul.f32 %v28, %v31
    %v34 = vmul.f32 %v33, %v33
    %v35 = vsub.f32 0.0, %v34
    %v36 = vpow.pop %v35
    %v37 = vld [vmem:[%s1] sm:$0xf]
    %vm38 = vcmask 64512
    %v40 = vsel %vm38, %v37, 0
    %42 = vmatprep.subr.mxu0 0.0
    %v43 = vand.u32 %v36, 4294901760
    %44 = vmatpush1.msra.mxu0 %v43
    %45 = vmatprep.subr.mxu0 0.0
    %46 = vmatpush1.msra.mxu0 0.0
    %47 = vmatprep.subr.mxu0 0.0
    %48 = vmatpush1.msra.mxu0 0.0
    %49 = vmatprep.subr.mxu0 0.0
    %50 = vmatpush1.msra.mxu0 0.0
    %51 = vmatprep.subr.mxu0 0.0
    %52 = vmatpush1.msra.mxu0 0.0
    %53 = vmatprep.subr.mxu0 0.0
    %54 = vmatpush1.msra.mxu0 0.0
    %55 = vmatprep.subr.mxu0 0.0
    %56 = vmatpush1.msra.mxu0 0.0
    %57 = vmatprep.subr.mxu0 0.0
    %58 = vmatpush1.msra.mxu0 0.0
    %59 = vmatprep.subr.mxu0 0.0
    %60 = vmatpush1.msra.mxu0 0.0
    %61 = vmatprep.subr.mxu0 0.0
    %62 = vmatpush1.msra.mxu0 0.0
    %63 = vmatprep.subr.mxu0 0.0
    %64 = vmatpush1.msra.mxu0 0.0
    %65 = vmatprep.subr.mxu0 0.0
    %66 = vmatpush1.msra.mxu0 0.0
    %67 = vmatprep.subr.mxu0 0.0
    %68 = vmatpush1.msra.mxu0 0.0
    %69 = vmatprep.subr.mxu0 0.0
    %70 = vmatpush1.msra.mxu0 0.0
    %71 = vmatprep.subr.mxu0 0.0
    %72 = vmatpush1.msra.mxu0 0.0
    %73 = vmatprep.subr.mxu0 0.0
    %74 = vmatpush1.msra.mxu0 0.0
    %75 = vmatprep.subr.mxu0 0.0
    %76 = vmatpush1.msra.mxu0 0.0
    %77 = vmatprep.subr.mxu0 0.0
    %78 = vmatpush1.msra.mxu0 0.0
    %79 = vmatprep.subr.mxu0 0.0
    %80 = vmatpush1.msra.mxu0 0.0
    %81 = vmatprep.subr.mxu0 0.0
    %82 = vmatpush1.msra.mxu0 0.0
    %83 = vmatprep.subr.mxu0 0.0
    %84 = vmatpush1.msra.mxu0 0.0
    %85 = vmatprep.subr.mxu0 0.0
    %86 = vmatpush1.msra.mxu0 0.0
    %87 = vmatprep.subr.mxu0 0.0
    %88 = vmatpush1.msra.mxu0 0.0
    %89 = vmatprep.subr.mxu0 0.0
    %90 = vmatpush1.msra.mxu0 0.0
    %91 = vmatprep.subr.mxu0 0.0
    %92 = vmatpush1.msra.mxu0 0.0
    %93 = vmatprep.subr.mxu0 0.0
    %94 = vmatpush1.msra.mxu0 0.0
    %95 = vmatprep.subr.mxu0 0.0
    %96 = vmatpush1.msra.mxu0 0.0
    %97 = vmatprep.subr.mxu0 0.0
    %98 = vmatpush1.msra.mxu0 0.0
    %99 = vmatprep.subr.mxu0 0.0
    %100 = vmatpush1.msra.mxu0 0.0
    %101 = vmatprep.subr.mxu0 0.0
    %102 = vmatpush1.msra.mxu0 0.0
    %103 = vmatprep.subr.mxu0 0.0
    %104 = vmatpush1.msra.mxu0 0.0
    %105 = vmatprep.subr.mxu0 0.0
    %106 = vmatpush1.msra.mxu0 0.0
    %107 = vmatprep.mubr.f32.mxu0 0.0
    %v108 = vand.u32 %v40, 4294901760
    %v109 = vsub.f32 %v40, %v108
    %v110 = vand.u32 %v109, 4294901760
    %v111 = vsub.f32 %v109, %v110
    %v112 = vand.u32 %v111, 4294901760
    %113 = vmatmul.mubr.f32.gmra.mrb[0].mxu0 %v112
    %v114 = vpop.f32.mrb[0].mxu0
    %v115 = vadd.f32 0.0, %v114
    %v116 = vpop.f32.mrb[0].mxu0
    %117 = vdwg.mxu0
    %118 = vmatprep.subr.mxu0 0.0
    %v119 = vand.u32 %v36, 4294901760
    %v120 = vsub.f32 %v36, %v119
    %v121 = vand.u32 %v120, 4294901760
    %v122 = vsub.f32 %v120, %v121
    %v123 = vand.u32 %v122, 4294901760
    %124 = vmatpush1.msra.mxu0 %v123
    %125 = vmatprep.subr.mxu0 0.0
    %126 = vmatpush1.msra.mxu0 0.0
    %127 = vmatprep.subr.mxu0 0.0
    %128 = vmatpush1.msra.mxu0 0.0
    %129 = vmatprep.subr.mxu0 0.0
    %130 = vmatpush1.msra.mxu0 0.0
    %131 = vmatprep.subr.mxu0 0.0
    %132 = vmatpush1.msra.mxu0 0.0
    %133 = vmatprep.subr.mxu0 0.0
    %134 = vmatpush1.msra.mxu0 0.0
    %135 = vmatprep.subr.mxu0 0.0
    %136 = vmatpush1.msra.mxu0 0.0
    %137 = vmatprep.subr.mxu0 0.0
    %138 = vmatpush1.msra.mxu0 0.0
    %139 = vmatprep.subr.mxu0 0.0
    %140 = vmatpush1.msra.mxu0 0.0
    %141 = vmatprep.subr.mxu0 0.0
    %142 = vmatpush1.msra.mxu0 0.0
    %143 = vmatprep.subr.mxu0 0.0
    %144 = vmatpush1.msra.mxu0 0.0
    %145 = vmatprep.subr.mxu0 0.0
    %146 = vmatpush1.msra.mxu0 0.0
    %147 = vmatprep.subr.mxu0 0.0
    %148 = vmatpush1.msra.mxu0 0.0
    %149 = vmatprep.subr.mxu0 0.0
    %150 = vmatpush1.msra.mxu0 0.0
    %151 = vmatprep.subr.mxu0 0.0
    %152 = vmatpush1.msra.mxu0 0.0
    %153 = vmatprep.subr.mxu0 0.0
    %154 = vmatpush1.msra.mxu0 0.0
    %155 = vmatprep.subr.mxu0 0.0
    %156 = vmatpush1.msra.mxu0 0.0
    %157 = vmatprep.subr.mxu0 0.0
    %158 = vmatpush1.msra.mxu0 0.0
    %159 = vmatprep.subr.mxu0 0.0
    %160 = vmatpush1.msra.mxu0 0.0
    %161 = vmatprep.subr.mxu0 0.0
    %162 = vmatpush1.msra.mxu0 0.0
    %163 = vmatprep.subr.mxu0 0.0
    %164 = vmatpush1.msra.mxu0 0.0
    %165 = vmatprep.subr.mxu0 0.0
    %166 = vmatpush1.msra.mxu0 0.0
    %167 = vmatprep.subr.mxu0 0.0
    %168 = vmatpush1.msra.mxu0 0.0
    %169 = vmatprep.subr.mxu0 0.0
    %170 = vmatpush1.msra.mxu0 0.0
    %171 = vmatprep.subr.mxu0 0.0
    %172 = vmatpush1.msra.mxu0 0.0
    %173 = vmatprep.subr.mxu0 0.0
    %174 = vmatpush1.msra.mxu0 0.0
    %175 = vmatprep.subr.mxu0 0.0
    %176 = vmatpush1.msra.mxu0 0.0
    %177 = vmatprep.subr.mxu0 0.0
    %178 = vmatpush1.msra.mxu0 0.0
    %179 = vmatprep.subr.mxu0 0.0
    %180 = vmatpush1.msra.mxu0 0.0
    %181 = vmatprep.subr.mxu0 0.0
    %182 = vmatpush1.msra.mxu0 0.0
    %183 = vmatprep.subr.mxu0 0.0
    %184 = vmatpush1.msra.mxu0 0.0
    %185 = vmatprep.subr.mxu0 0.0
    %186 = vmatpush1.msra.mxu0 0.0
    %187 = vmatprep.mubr.f32.mxu0 0.0
    %v188 = vand.u32 %v40, 4294901760
    %189 = vmatmul.mubr.f32.gmra.mrb[0].mxu0 %v188
    %v190 = vpop.f32.mrb[0].mxu0
    %v191 = vadd.f32 %v115, %v190
    %v192 = vpop.f32.mrb[0].mxu0
    %193 = vdwg.mxu0
    %194 = vmatprep.subr.mxu0 0.0
    %v195 = vand.u32 %v36, 4294901760
    %v196 = vsub.f32 %v36, %v195
    %197 = vmatpush1.msra.mxu0 %v196
    %198 = vmatprep.subr.mxu0 0.0
    %199 = vmatpush1.msra.mxu0 0.0
    %200 = vmatprep.subr.mxu0 0.0
    %201 = vmatpush1.msra.mxu0 0.0
    %202 = vmatprep.subr.mxu0 0.0
    %203 = vmatpush1.msra.mxu0 0.0
    %204 = vmatprep.subr.mxu0 0.0
    %205 = vmatpush1.msra.mxu0 0.0
    %206 = vmatprep.subr.mxu0 0.0
    %207 = vmatpush1.msra.mxu0 0.0
    %208 = vmatprep.subr.mxu0 0.0
    %209 = vmatpush1.msra.mxu0 0.0
    %210 = vmatprep.subr.mxu0 0.0
    %211 = vmatpush1.msra.mxu0 0.0
    %212 = vmatprep.subr.mxu0 0.0
    %213 = vmatpush1.msra.mxu0 0.0
    %214 = vmatprep.subr.mxu0 0.0
    %215 = vmatpush1.msra.mxu0 0.0
    %216 = vmatprep.subr.mxu0 0.0
    %217 = vmatpush1.msra.mxu0 0.0
    %218 = vmatprep.subr.mxu0 0.0
    %219 = vmatpush1.msra.mxu0 0.0
    %220 = vmatprep.subr.mxu0 0.0
    %221 = vmatpush1.msra.mxu0 0.0
    %222 = vmatprep.subr.mxu0 0.0
    %223 = vmatpush1.msra.mxu0 0.0
    %224 = vmatprep.subr.mxu0 0.0
    %225 = vmatpush1.msra.mxu0 0.0
    %226 = vmatprep.subr.mxu0 0.0
    %227 = vmatpush1.msra.mxu0 0.0
    %228 = vmatprep.subr.mxu0 0.0
    %229 = vmatpush1.msra.mxu0 0.0
    %230 = vmatprep.subr.mxu0 0.0
    %231 = vmatpush1.msra.mxu0 0.0
    %232 = vmatprep.subr.mxu0 0.0
    %233 = vmatpush1.msra.mxu0 0.0
    %234 = vmatprep.subr.mxu0 0.0
    %235 = vmatpush1.msra.mxu0 0.0
    %236 = vmatprep.subr.mxu0 0.0
    %237 = vmatpush1.msra.mxu0 0.0
    %238 = vmatprep.subr.mxu0 0.0
    %239 = vmatpush1.msra.mxu0 0.0
    %240 = vmatprep.subr.mxu0 0.0
    %241 = vmatpush1.msra.mxu0 0.0
    %242 = vmatprep.subr.mxu0 0.0
    %243 = vmatpush1.msra.mxu0 0.0
    %244 = vmatprep.subr.mxu0 0.0
    %245 = vmatpush1.msra.mxu0 0.0
    %246 = vmatprep.subr.mxu0 0.0
    %247 = vmatpush1.msra.mxu0 0.0
    %248 = vmatprep.subr.mxu0 0.0
    %249 = vmatpush1.msra.mxu0 0.0
    %250 = vmatprep.subr.mxu0 0.0
    %251 = vmatpush1.msra.mxu0 0.0
    %252 = vmatprep.subr.mxu0 0.0
    %253 = vmatpush1.msra.mxu0 0.0
    %254 = vmatprep.subr.mxu0 0.0
    %255 = vmatpush1.msra.mxu0 0.0
    %256 = vmatprep.subr.mxu0 0.0
    %257 = vmatpush1.msra.mxu0 0.0
    %258 = vmatprep.subr.mxu0 0.0
    %259 = vmatpush1.msra.mxu0 0.0
    %260 = vmatprep.mubr.f32.mxu0 0.0
    %v261 = vand.u32 %v40, 4294901760
    %v262 = vsub.f32 %v40, %v261
    %263 = vmatmul.mubr.f32.gmra.mrb[0].mxu0 %v262
    %v264 = vpop.f32.mrb[0].mxu0
    %v265 = vadd.f32 %v191, %v264
    %v266 = vpop.f32.mrb[0].mxu0
    %267 = vdwg.mxu0
    %268 = vmatprep.subr.mxu0 0.0
    %v269 = vand.u32 %v36, 4294901760
    %270 = vmatpush1.msra.mxu0 %v269
    %271 = vmatprep.subr.mxu0 0.0
    %272 = vmatpush1.msra.mxu0 0.0
    %273 = vmatprep.subr.mxu0 0.0
    %274 = vmatpush1.msra.mxu0 0.0
    %275 = vmatprep.subr.mxu0 0.0
    %276 = vmatpush1.msra.mxu0 0.0
    %277 = vmatprep.subr.mxu0 0.0
    %278 = vmatpush1.msra.mxu0 0.0
    %279 = vmatprep.subr.mxu0 0.0
    %280 = vmatpush1.msra.mxu0 0.0
    %281 = vmatprep.subr.mxu0 0.0
    %282 = vmatpush1.msra.mxu0 0.0
    %283 = vmatprep.subr.mxu0 0.0
    %284 = vmatpush1.msra.mxu0 0.0
    %285 = vmatprep.subr.mxu0 0.0
    %286 = vmatpush1.msra.mxu0 0.0
    %287 = vmatprep.subr.mxu0 0.0
    %288 = vmatpush1.msra.mxu0 0.0
    %289 = vmatprep.subr.mxu0 0.0
    %290 = vmatpush1.msra.mxu0 0.0
    %291 = vmatprep.subr.mxu0 0.0
    %292 = vmatpush1.msra.mxu0 0.0
    %293 = vmatprep.subr.mxu0 0.0
    %294 = vmatpush1.msra.mxu0 0.0
    %295 = vmatprep.subr.mxu0 0.0
    %296 = vmatpush1.msra.mxu0 0.0
    %297 = vmatprep.subr.mxu0 0.0
    %298 = vmatpush1.msra.mxu0 0.0
    %299 = vmatprep.subr.mxu0 0.0
    %300 = vmatpush1.msra.mxu0 0.0
    %301 = vmatprep.subr.mxu0 0.0
    %302 = vmatpush1.msra.mxu0 0.0
    %303 = vmatprep.subr.mxu0 0.0
    %304 = vmatpush1.msra.mxu0 0.0
    %305 = vmatprep.subr.mxu0 0.0
    %306 = vmatpush1.msra.mxu0 0.0
    %307 = vmatprep.subr.mxu0 0.0
    %308 = vmatpush1.msra.mxu0 0.0
    %309 = vmatprep.subr.mxu0 0.0
    %310 = vmatpush1.msra.mxu0 0.0
    %311 = vmatprep.subr.mxu0 0.0
    %312 = vmatpush1.msra.mxu0 0.0
    %313 = vmatprep.subr.mxu0 0.0
    %314 = vmatpush1.msra.mxu0 0.0
    %315 = vmatprep.subr.mxu0 0.0
    %316 = vmatpush1.msra.mxu0 0.0
    %317 = vmatprep.subr.mxu0 0.0
    %318 = vmatpush1.msra.mxu0 0.0
    %319 = vmatprep.subr.mxu0 0.0
    %320 = vmatpush1.msra.mxu0 0.0
    %321 = vmatprep.subr.mxu0 0.0
    %322 = vmatpush1.msra.mxu0 0.0
    %323 = vmatprep.subr.mxu0 0.0
    %324 = vmatpush1.msra.mxu0 0.0
    %325 = vmatprep.subr.mxu0 0.0
    %326 = vmatpush1.msra.mxu0 0.0
    %327 = vmatprep.subr.mxu0 0.0
    %328 = vmatpush1.msra.mxu0 0.0
    %329 = vmatprep.subr.mxu0 0.0
    %330 = vmatpush1.msra.mxu0 0.0
    %331 = vmatprep.subr.mxu0 0.0
    %332 = vmatpush1.msra.mxu0 0.0
    %333 = vmatprep.mubr.f32.mxu0 0.0
    %v334 = vand.u32 %v40, 4294901760
    %v335 = vsub.f32 %v40, %v334
    %v336 = vand.u32 %v335, 4294901760
    %337 = vmatmul.mubr.f32.gmra.mrb[0].mxu0 %v336
    %v338 = vpop.f32.mrb[0].mxu0
    %v339 = vadd.f32 %v265, %v338
    %v340 = vpop.f32.mrb[0].mxu0
    %341 = vdwg.mxu0
    %342 = vmatprep.subr.mxu0 0.0
    %v343 = vand.u32 %v36, 4294901760
    %v344 = vsub.f32 %v36, %v343
    %v345 = vand.u32 %v344, 4294901760
    %346 = vmatpush1.msra.mxu0 %v345
    %347 = vmatprep.subr.mxu0 0.0
    %348 = vmatpush1.msra.mxu0 0.0
    %349 = vmatprep.subr.mxu0 0.0
    %350 = vmatpush1.msra.mxu0 0.0
    %351 = vmatprep.subr.mxu0 0.0
    %352 = vmatpush1.msra.mxu0 0.0
    %353 = vmatprep.subr.mxu0 0.0
    %354 = vmatpush1.msra.mxu0 0.0
    %355 = vmatprep.subr.mxu0 0.0
    %356 = vmatpush1.msra.mxu0 0.0
    %357 = vmatprep.subr.mxu0 0.0
    %358 = vmatpush1.msra.mxu0 0.0
    %359 = vmatprep.subr.mxu0 0.0
    %360 = vmatpush1.msra.mxu0 0.0
    %361 = vmatprep.subr.mxu0 0.0
    %362 = vmatpush1.msra.mxu0 0.0
    %363 = vmatprep.subr.mxu0 0.0
    %364 = vmatpush1.msra.mxu0 0.0
    %365 = vmatprep.subr.mxu0 0.0
    %366 = vmatpush1.msra.mxu0 0.0
    %367 = vmatprep.subr.mxu0 0.0
    %368 = vmatpush1.msra.mxu0 0.0
    %369 = vmatprep.subr.mxu0 0.0
    %370 = vmatpush1.msra.mxu0 0.0
    %371 = vmatprep.subr.mxu0 0.0
    %372 = vmatpush1.msra.mxu0 0.0
    %373 = vmatprep.subr.mxu0 0.0
    %374 = vmatpush1.msra.mxu0 0.0
    %375 = vmatprep.subr.mxu0 0.0
    %376 = vmatpush1.msra.mxu0 0.0
    %377 = vmatprep.subr.mxu0 0.0
    %378 = vmatpush1.msra.mxu0 0.0
    %379 = vmatprep.subr.mxu0 0.0
    %380 = vmatpush1.msra.mxu0 0.0
    %381 = vmatprep.subr.mxu0 0.0
    %382 = vmatpush1.msra.mxu0 0.0
    %383 = vmatprep.subr.mxu0 0.0
    %384 = vmatpush1.msra.mxu0 0.0
    %385 = vmatprep.subr.mxu0 0.0
    %386 = vmatpush1.msra.mxu0 0.0
    %387 = vmatprep.subr.mxu0 0.0
    %388 = vmatpush1.msra.mxu0 0.0
    %389 = vmatprep.subr.mxu0 0.0
    %390 = vmatpush1.msra.mxu0 0.0
    %391 = vmatprep.subr.mxu0 0.0
    %392 = vmatpush1.msra.mxu0 0.0
    %393 = vmatprep.subr.mxu0 0.0
    %394 = vmatpush1.msra.mxu0 0.0
    %395 = vmatprep.subr.mxu0 0.0
    %396 = vmatpush1.msra.mxu0 0.0
    %397 = vmatprep.subr.mxu0 0.0
    %398 = vmatpush1.msra.mxu0 0.0
    %399 = vmatprep.subr.mxu0 0.0
    %400 = vmatpush1.msra.mxu0 0.0
    %401 = vmatprep.subr.mxu0 0.0
    %402 = vmatpush1.msra.mxu0 0.0
    %403 = vmatprep.subr.mxu0 0.0
    %404 = vmatpush1.msra.mxu0 0.0
    %405 = vmatprep.subr.mxu0 0.0
    %406 = vmatpush1.msra.mxu0 0.0
    %407 = vmatprep.subr.mxu0 0.0
    %408 = vmatpush1.msra.mxu0 0.0
    %409 = vmatprep.mubr.f32.mxu0 0.0
    %v410 = vand.u32 %v40, 4294901760
    %411 = vmatmul.mubr.f32.gmra.mrb[0].mxu0 %v410
    %v412 = vpop.f32.mrb[0].mxu0
    %v413 = vadd.f32 %v339, %v412
    %v414 = vpop.f32.mrb[0].mxu0
    %415 = vdwg.mxu0
    %416 = vmatprep.subr.mxu0 0.0
    %v417 = vand.u32 %v36, 4294901760
    %418 = vmatpush1.msra.mxu0 %v417
    %419 = vmatprep.subr.mxu0 0.0
    %420 = vmatpush1.msra.mxu0 0.0
    %421 = vmatprep.subr.mxu0 0.0
    %422 = vmatpush1.msra.mxu0 0.0
    %423 = vmatprep.subr.mxu0 0.0
    %424 = vmatpush1.msra.mxu0 0.0
    %425 = vmatprep.subr.mxu0 0.0
    %426 = vmatpush1.msra.mxu0 0.0
    %427 = vmatprep.subr.mxu0 0.0
    %428 = vmatpush1.msra.mxu0 0.0
    %429 = vmatprep.subr.mxu0 0.0
    %430 = vmatpush1.msra.mxu0 0.0
    %431 = vmatprep.subr.mxu0 0.0
    %432 = vmatpush1.msra.mxu0 0.0
    %433 = vmatprep.subr.mxu0 0.0
    %434 = vmatpush1.msra.mxu0 0.0
    %435 = vmatprep.subr.mxu0 0.0
    %436 = vmatpush1.msra.mxu0 0.0
    %437 = vmatprep.subr.mxu0 0.0
    %438 = vmatpush1.msra.mxu0 0.0
    %439 = vmatprep.subr.mxu0 0.0
    %440 = vmatpush1.msra.mxu0 0.0
    %441 = vmatprep.subr.mxu0 0.0
    %442 = vmatpush1.msra.mxu0 0.0
    %443 = vmatprep.subr.mxu0 0.0
    %444 = vmatpush1.msra.mxu0 0.0
    %445 = vmatprep.subr.mxu0 0.0
    %446 = vmatpush1.msra.mxu0 0.0
    %447 = vmatprep.subr.mxu0 0.0
    %448 = vmatpush1.msra.mxu0 0.0
    %449 = vmatprep.subr.mxu0 0.0
    %450 = vmatpush1.msra.mxu0 0.0
    %451 = vmatprep.subr.mxu0 0.0
    %452 = vmatpush1.msra.mxu0 0.0
    %453 = vmatprep.subr.mxu0 0.0
    %454 = vmatpush1.msra.mxu0 0.0
    %455 = vmatprep.subr.mxu0 0.0
    %456 = vmatpush1.msra.mxu0 0.0
    %457 = vmatprep.subr.mxu0 0.0
    %458 = vmatpush1.msra.mxu0 0.0
    %459 = vmatprep.subr.mxu0 0.0
    %460 = vmatpush1.msra.mxu0 0.0
    %461 = vmatprep.subr.mxu0 0.0
    %462 = vmatpush1.msra.mxu0 0.0
    %463 = vmatprep.subr.mxu0 0.0
    %464 = vmatpush1.msra.mxu0 0.0
    %465 = vmatprep.subr.mxu0 0.0
    %466 = vmatpush1.msra.mxu0 0.0
    %467 = vmatprep.subr.mxu0 0.0
    %468 = vmatpush1.msra.mxu0 0.0
    %469 = vmatprep.subr.mxu0 0.0
    %470 = vmatpush1.msra.mxu0 0.0
    %471 = vmatprep.subr.mxu0 0.0
    %472 = vmatpush1.msra.mxu0 0.0
    %473 = vmatprep.subr.mxu0 0.0
    %474 = vmatpush1.msra.mxu0 0.0
    %475 = vmatprep.subr.mxu0 0.0
    %476 = vmatpush1.msra.mxu0 0.0
    %477 = vmatprep.subr.mxu0 0.0
    %478 = vmatpush1.msra.mxu0 0.0
    %479 = vmatprep.subr.mxu0 0.0
    %480 = vmatpush1.msra.mxu0 0.0
    %481 = vmatprep.mubr.f32.mxu0 0.0
    %v482 = vand.u32 %v40, 4294901760
    %483 = vmatmul.mubr.f32.gmra.mrb[0].mxu0 %v482
    %v484 = vpop.f32.mrb[0].mxu0
    %v485 = vadd.f32 %v413, %v484
    %v486 = vpop.f32.mrb[0].mxu0
    %487 = vdwg.mxu0
    %488 = vst [vmem:[#allocation2] sm:$0xf] %v485
    // Predicated region
    $region14: #{tpu_custom_call.1} parent=1 // pred_check
      _
    $region15: #{tpu_custom_call.1} parent=1 // pred_check_branch
      %490 = sbr.rel (0) target = $region17
    $region16: #{tpu_custom_call.1} parent=1 // pred_region
      %s492 = ssub.s32 64, 64
      %493 = vsyncadd [#allocation3], %s492
      %s495 = sshll.u32 [#allocation2], 4
      %s496 = int_to_ptr.vmem [resolvable:$true] %s495
      %498 = dma.vmem_to_hbm [thread:$0]  %s496, 64, %s3, [#allocation3]
    $region17: #{tpu_custom_call.1} parent=1 // pred_fallthru
      _
    // Predicated region
    $region18: #{tpu_custom_call.1} parent=1 // pred_check
      _
    $region19: #{tpu_custom_call.1} parent=1 // pred_check_branch
      %500 = sbr.rel (0) target = $region21
    $region20: #{tpu_custom_call.1} parent=1 // pred_region
      %501 = dma.done [#allocation3], 64
    $region21: #{tpu_custom_call.1} parent=1 // pred_fallthru
      _
    %502 = vsyncpa [#allocation3], 1

</llo_original>
